<compile_context>
chip_gen: v5e
topology: v5e:2x2
jax: 0.10.0
libtpu: 0.0.40
codegen_flags: <defaults>
</compile_context>

<pallas_src>
import jax
import jax.numpy as jnp
from jax.experimental import pallas as pl
from jax.experimental.pallas import tpu as pltpu


def _cdiv(a, b):
    return (a + b - 1) // b


def _round_up(a, b):
    return _cdiv(a, b) * b


def _bcast_kernel(w_ref, o_ref):
    # w_ref: weight tile ((tl, hidden) or (1, tf)); o_ref: fused-batch output
    # slab ((tb, tl, hidden) or (tb, tf)).  Single hoisted broadcast -> one
    # dense full-slab store per grid step.
    o_ref[...] = jnp.broadcast_to(w_ref[...], o_ref.shape)


def positional_embedding_direct(
    x,
    weight,
    *,
    out_block_bytes=4 * 1024 * 1024,    # per-step output slab (double-buffered)
    w_tile_bytes=4 * 1024 * 1024,       # cap on the (VMEM-padded) weight tile per buffer
    flat_unaligned_limit=512 * 1024,    # max raw bytes for a single full-lane (1, feat) tile
):
    """weight (max_len, hidden) broadcast to (batch, max_len, hidden)."""
    batch = x.shape[0]
    max_len, hidden = weight.shape
    feat = max_len * hidden
    itemsize = jnp.dtype(weight.dtype).itemsize

    # Layout choice: flatten to (B, feat) only when hidden is lane-unaligned
    # and the flattened layout stays lane-dense / small enough.
    use_flat = (hidden % 128 != 0) and (
        feat % 128 == 0 or feat * itemsize <= flat_unaligned_limit
    )

    if not use_flat:
        # -------- Path A: natural (B, max_len, hidden) blocks --------
        row_bytes = hidden * itemsize
        tl = max(1, w_tile_bytes // max(1, row_bytes))
        if tl >= max_len:
            tl = max_len                       # full seq extent (always legal)
        else:
            tl = max(8, (tl // 8) * 8)         # sublane-dense seq tile
            tl = min(tl, max_len)

        tile_bytes = tl * hidden * itemsize
        tb = max(1, min(batch, out_block_bytes // max(1, tile_bytes)))

        n_row = _cdiv(max_len, tl)
        if n_row == 1 and batch >= 16 and tb >= batch:
            # Keep >=2 grid steps so a multi-TensorCore chip (v7x) can shard
            # the batch axis; costs at most one extra ~0.35us step elsewhere.
            tb = _cdiv(batch, 2)
        n_b = _cdiv(batch, tb)

        # Padded VMEM accounting (sublane->8, lane->128), per buffer.
        out_buf = tb * _round_up(tl, 8) * _round_up(hidden, 128)
        w_buf = _round_up(tl, 8) * _round_up(hidden, 128)

        w_in = weight
        out_shape = jax.ShapeDtypeStruct((batch, max_len, hidden), weight.dtype)
        if n_row == 1:
            grid = (n_b,)
            w_spec = pl.BlockSpec((tl, hidden), lambda b: (0, 0))
            o_spec = pl.BlockSpec((tb, tl, hidden), lambda b: (b, 0, 0))
        else:
            # Row tiles outer, batch inner: the weight tile's block index is
            # constant across consecutive (inner) steps, so Pallas fetches
            # each weight tile from HBM exactly once.
            grid = (n_row, n_b)
            w_spec = pl.BlockSpec((tl, hidden), lambda r, b: (r, 0))
            o_spec = pl.BlockSpec((tb, tl, hidden), lambda r, b: (b, r, 0))
        reshape_out = None
    else:
        # -------- Path B: flattened, lane-dense (B, feat) blocks --------
        if feat % 128 == 0:
            # Budget the weight tile by its *padded* footprint: a (1, tf)
            # block occupies 8 sublanes -> 8*tf*itemsize bytes per buffer.
            tf = (w_tile_bytes // (8 * itemsize)) // 128 * 128
            tf = max(128, min(feat, tf))
        else:
            tf = feat                          # small; full lane extent is legal
        n_row = _cdiv(feat, tf)

        tb = max(1, min(batch, out_block_bytes // max(1, tf * itemsize)))
        if tb < batch:
            tb = max(8, (tb // 8) * 8)         # sublane-dense output blocks
        if n_row == 1 and batch >= 16 and tb >= batch:
            tb = max(8, (_cdiv(batch, 2) // 8) * 8)
        n_b = _cdiv(batch, tb)

        out_buf = _round_up(tb, 8) * _round_up(tf, 128)
        w_buf = 8 * _round_up(tf, 128)

        w_in = weight.reshape(1, feat)         # free row-major reshape
        out_shape = jax.ShapeDtypeStruct((batch, feat), weight.dtype)
        if n_row == 1:
            grid = (n_b,)
            w_spec = pl.BlockSpec((1, tf), lambda b: (0, 0))
            o_spec = pl.BlockSpec((tb, tf), lambda b: (b, 0))
        else:
            grid = (n_row, n_b)
            w_spec = pl.BlockSpec((1, tf), lambda r, b: (0, r))
            o_spec = pl.BlockSpec((tb, tf), lambda r, b: (b, r))
        reshape_out = (batch, max_len, hidden)  # free row-major reshape back

    vmem_need = 2 * (out_buf + w_buf) * itemsize + (1 << 20)

    cost = pl.CostEstimate(
        flops=0,
        transcendentals=0,
        bytes_accessed=(batch * feat + feat) * itemsize,
    )

    out = pl.pallas_call(
        _bcast_kernel,
        out_shape=out_shape,
        grid_spec=pltpu.PrefetchScalarGridSpec(
            num_scalar_prefetch=0,
            grid=grid,
            in_specs=[w_spec],
            out_specs=o_spec,
        ),
        compiler_params=pltpu.CompilerParams(
            dimension_semantics=("parallel",) * len(grid),
            vmem_limit_bytes=int(max(vmem_need, 4 << 20)),
        ),
        cost_estimate=cost,
    )(w_in)

    if reshape_out is not None:
        out = out.reshape(reshape_out)
    return out


if __name__ == "__main__":
    # Small shapes consistent with the module: args.max_len, args.hidden_units.
    batch = 2
    seq = 8          # length of x (irrelevant to output values, only batch used)
    max_len = 8      # args.max_len
    hidden = 32      # args.hidden_units

    key = jax.random.PRNGKey(0)
    k_w, k_x = jax.random.split(key)

    # Deterministic synthetic parameters (nn.Embedding(max_len, hidden).weight).
    weight = jax.random.normal(k_w, (max_len, hidden), dtype=jnp.float32)

    # Synthetic input x: (batch, seq) integer "token ids"; only x.shape[0] matters.
    x = jax.random.randint(k_x, (batch, seq), minval=0, maxval=max_len, dtype=jnp.int32)

    out = positional_embedding_direct(x, weight)
    out = jax.block_until_ready(out)

    # Reference check: pure-JAX equivalent of weight.unsqueeze(0).repeat(B,1,1)
    ref = jnp.broadcast_to(weight[None, :, :], (batch, max_len, hidden))
    assert out.shape == (batch, max_len, hidden), out.shape
    assert out.dtype == jnp.float32, out.dtype
    assert jnp.array_equal(out, ref), "mismatch vs reference broadcast"

    print("KERNEL_OK")
</pallas_src>

<mosaic_0001>
module attributes {stable_mosaic.version = 11 : i64} {
  func.func @_bcast_kernel(%arg0: i32, %arg1: memref<1x256xf32, #tpu.memory_space<vmem>>, %arg2: memref<2x256xf32, #tpu.memory_space<vmem>>) attributes {dimension_semantics = [#tpu.dimension_semantics<parallel>], iteration_bounds = array<i64: 1>, scalar_prefetch = 0 : i64, scratch_operands = 0 : i64, tpu.core_type = #tpu.core_type<tc>, window_params = [{pipeline_mode = #tpu.pipeline_mode<synchronous>, transform_indices = @transform_0, window_bounds = array<i64: 1, 256>}, {transform_indices = @transform_1, window_bounds = array<i64: 2, 256>}]} {
    %c0 = arith.constant 0 : index
    %c0_0 = arith.constant 0 : index
    %0 = vector.load %arg1[%c0, %c0_0] : memref<1x256xf32, #tpu.memory_space<vmem>>, vector<1x256xf32>
    %1 = vector.shape_cast %0 : vector<1x256xf32> to vector<1x256xf32>
    %2 = vector.broadcast %1 : vector<1x256xf32> to vector<2x256xf32>
    %c0_1 = arith.constant 0 : index
    %c0_2 = arith.constant 0 : index
    %3 = vector.load %arg2[%c0_1, %c0_2] : memref<2x256xf32, #tpu.memory_space<vmem>>, vector<2x256xf32>
    tpu.vector_store %arg2[%c0_1, %c0_2], %2 {strides = array<i32>} : memref<2x256xf32, #tpu.memory_space<vmem>>, vector<2x256xf32>,
    return
  }
  func.func @transform_0(%arg0: i32) -> (i32, i32) {
    %c0_i32 = arith.constant 0 : i32
    %c0_i32_0 = arith.constant 0 : i32
    %c0_i32_1 = arith.constant 0 : i32
    return %c0_i32, %c0_i32_0 : i32, i32
  }
  func.func @transform_1(%arg0: i32) -> (i32, i32) {
    %c0_i32 = arith.constant 0 : i32
    %c0_i32_0 = arith.constant 0 : i32
    return %arg0, %c0_i32 : i32, i32
  }
}

</mosaic_0001>

<llo_original>
// kernel: tpu_custom_call.1
$region0: #{tpu_custom_call.1}
  #allocation0 [shape = 'u32[]', space=smem, size = 0x4, offset = 0x4, fixed_abs, tag = 'smem constant byte address 0x4 - core index']
  #allocation1 [shape = 'u32[72,128]{1,0:T(1,128)}', space=vmem, size = 0x9000, scoped, tag = 'internal scratch']
  %s0 = inlined_call_operand.hbm [shape: f32[1,256], index: 0, kind: input, shape index: {}]
  %s1 = inlined_call_operand.hbm [shape: f32[2,256], index: 1, kind: output, shape index: {}]
  %s2 = sld [smem:[#allocation0]]
  $region18: #{tpu_custom_call.1} parent=0
    _
  %s4 = ssub.s32 1, %s2
  %s5 = scalar_select 0, %s4, %s2
  $region1: #{tpu_custom_call.1} parent=0
    #allocation2 [shape = 'u8[1024]{0}', space=vmem, size = 0x400, scoped, tag = 'input window, operand 0, single buffered']
    #allocation3 [shape = 's32[1]{0}', space=sflag, size = 0x4, scoped, tag = 'scoped memory for tpu_custom_call.1']
    #allocation4 [shape = 's32[1]{0}', space=sflag, size = 0x4, scoped, tag = 'scoped memory for tpu_custom_call.1']
    #allocation5 [shape = 'u8[2048]{0}', space=vmem, size = 0x800, scoped, tag = 'output window, operand 0, single buffered']
    %6 = vsyncpa [#allocation3], 0
    %7 = vsyncpa [#allocation4], 0
    // Predicated region
    $region2: #{tpu_custom_call.1} parent=1 // pred_check
      _
    $region3: #{tpu_custom_call.1} parent=1 // pred_check_branch
      %9 = sbr.rel (0) target = $region5
    $region4: #{tpu_custom_call.1} parent=1 // pred_region
      %11 = vsyncadd [#allocation3], 0
      %s13 = sshll.u32 %s0, 4
      %s14 = int_to_ptr.hbm [resolvable:$true] %s13
      %s15 = sshll.u32 [#allocation2], 4
      %s16 = int_to_ptr.vmem [resolvable:$true] %s15
      %18 = dma.hbm_to_vmem [thread:$0]  %s14, 32, %s16, [#allocation3]
    $region5: #{tpu_custom_call.1} parent=1 // pred_fallthru
      _
    // Predicated region
    $region6: #{tpu_custom_call.1} parent=1 // pred_check
      _
    $region7: #{tpu_custom_call.1} parent=1 // pred_check_branch
      %20 = sbr.rel (0) target = $region9
    $region8: #{tpu_custom_call.1} parent=1 // pred_region
      %22 = dma.done [#allocation3], 32
    $region9: #{tpu_custom_call.1} parent=1 // pred_fallthru
      _
    %v23 = vld [vmem:[#allocation2] sm:$0x3]
    %v25 = vperm.slane %v23, 0
    %v26 = vperm.slane %v23, 1
    %v27 = vrot.slane %v26, 6
    %vm28 = vcmask 1041408
    %v29 = vsel %vm28, %v25, %v27
    %31 = vst [vmem:[#allocation5] sm:$0xf] %v29
    // Predicated region
    $region10: #{tpu_custom_call.1} parent=1 // pred_check
      _
    $region11: #{tpu_custom_call.1} parent=1 // pred_check_branch
      %33 = sbr.rel (0) target = $region13
    $region12: #{tpu_custom_call.1} parent=1 // pred_region
      %35 = vsyncadd [#allocation4], 0
      %s37 = sshll.u32 [#allocation5], 4
      %s38 = int_to_ptr.vmem [resolvable:$true] %s37
      %s39 = sshll.u32 %s1, 4
      %s40 = int_to_ptr.hbm [resolvable:$true] %s39
      %42 = dma.vmem_to_hbm [thread:$0]  %s38, 64, %s40, [#allocation4]
    $region13: #{tpu_custom_call.1} parent=1 // pred_fallthru
      _
    // Predicated region
    $region14: #{tpu_custom_call.1} parent=1 // pred_check
      _
    $region15: #{tpu_custom_call.1} parent=1 // pred_check_branch
      %44 = sbr.rel (0) target = $region17
    $region16: #{tpu_custom_call.1} parent=1 // pred_region
      %46 = dma.done [#allocation4], 64
    $region17: #{tpu_custom_call.1} parent=1 // pred_fallthru
      _
    %47 = vsyncpa [#allocation3], 1
    %48 = vsyncpa [#allocation4], 1

</llo_original>
